<compile_context>
chip_gen: v5e
topology: v5e:2x2
jax: 0.10.0
libtpu: 0.0.40
codegen_flags: <defaults>
</compile_context>

<pallas_src>
import jax
import jax.numpy as jnp
from jax.experimental import pallas as pl
from jax.experimental.pallas import tpu as pltpu


def _round_up(x: int, m: int) -> int:
    return ((x + m - 1) // m) * m


def gated_head_kernel(x_ref, wa_ref, wg_ref, ba_ref, bg_ref, o_ref):
    # x_ref: [B, F]   wa/wg_ref: [F, tn]   ba/bg_ref: [1, tn]   o_ref: [B, tn]
    x = x_ref[...]
    a = jnp.dot(x, wa_ref[...], preferred_element_type=jnp.float32)
    g = jnp.dot(x, wg_ref[...], preferred_element_type=jnp.float32)
    a = a + ba_ref[...].astype(jnp.float32)
    g = g + bg_ref[...].astype(jnp.float32)
    # sigmoid(a) * sigmoid(g) == 1 / ((1 + e^-a) * (1 + e^-g)):
    # two EUP exps + one divide instead of two full sigmoids and a multiply.
    denom = (1.0 + jnp.exp(-a)) * (1.0 + jnp.exp(-g))
    o_ref[...] = pl.reciprocal(denom, approx=False).astype(o_ref.dtype)


def gated_head(x, w_t, b, *, tn=None, weight_dtype=None):
    """GatedHead forward.

    x:   [B, F]   activations
    w_t: [F, 2C]  linear weight, transposed (torch weight.T)
    b:   [2C]     linear bias
    ->   [B, C]   sigmoid(y[:, :C]) * sigmoid(y[:, C:])

    weight_dtype: optionally cast the streamed weights (e.g. jnp.bfloat16);
    accumulation stays f32.
    """
    B, F = x.shape
    two_c = w_t.shape[1]
    assert two_c % 2 == 0, "weight must have 2*num_classes columns"
    C = two_c // 2

    # Split into act / gate halves (lane-dense operands; correct pairing when
    # the class dimension is tiled).
    w_act, w_gate = w_t[:, :C], w_t[:, C:]
    b_act = b[:C].reshape(1, C)
    b_gate = b[C:].reshape(1, C)

    if weight_dtype is not None:
        w_act = w_act.astype(weight_dtype)
        w_gate = w_gate.astype(weight_dtype)

    # Lane-dense class tile: multiple of 128, capped at 512 so that
    # 2 weight streams x 2 pipeline buffers x (F x tn) stays far under the
    # v7x 64 MiB VMEM even for realistic tagger shapes (F~1k, 2C~18k).
    if tn is None:
        tn = min(512, _round_up(C, 128))
    tn = _round_up(tn, 128)
    C_pad = _round_up(C, tn)
    B_pad = _round_up(B, 8)

    if C_pad != C:
        pc = C_pad - C
        w_act = jnp.pad(w_act, ((0, 0), (0, pc)))
        w_gate = jnp.pad(w_gate, ((0, 0), (0, pc)))
        b_act = jnp.pad(b_act, ((0, 0), (0, pc)))
        b_gate = jnp.pad(b_gate, ((0, 0), (0, pc)))
    if B_pad != B:
        x = jnp.pad(x, ((0, B_pad - B), (0, 0)))

    grid = (C_pad // tn,)

    wbytes = jnp.dtype(w_act.dtype).itemsize
    xbytes = jnp.dtype(x.dtype).itemsize
    obytes = xbytes

    # Rough double-buffered VMEM footprint + headroom; floor at 32 MiB
    # (still within every chip's physical VMEM, incl. v7x's 64 MiB).
    vmem_bytes = (
        2 * B_pad * F * xbytes        # resident x (worst case double-buffered)
        + 2 * 2 * F * tn * wbytes     # two streamed weight tiles, 2 buffers each
        + 2 * 2 * tn * 4              # bias tiles
        + 2 * B_pad * tn * obytes     # output tiles
        + (4 << 20)                   # headroom
    )
    vmem_limit = int(max(vmem_bytes, 32 * 1024 * 1024))

    cost = pl.CostEstimate(
        flops=2 * B * F * 2 * C,
        transcendentals=2 * B * C,
        bytes_accessed=(F * 2 * C * wbytes + B * F * xbytes
                        + 2 * C * 4 + B * C * obytes),
    )

    out_padded = pl.pallas_call(
        gated_head_kernel,
        out_shape=jax.ShapeDtypeStruct((B_pad, C_pad), x.dtype),
        grid_spec=pltpu.PrefetchScalarGridSpec(
            num_scalar_prefetch=0,
            grid=grid,
            in_specs=[
                pl.BlockSpec((B_pad, F), lambda j: (0, 0)),  # x: VMEM-resident
                pl.BlockSpec((F, tn), lambda j: (0, j)),     # W_act tile (streamed)
                pl.BlockSpec((F, tn), lambda j: (0, j)),     # W_gate tile (streamed)
                pl.BlockSpec((1, tn), lambda j: (0, j)),     # b_act tile
                pl.BlockSpec((1, tn), lambda j: (0, j)),     # b_gate tile
            ],
            out_specs=pl.BlockSpec((B_pad, tn), lambda j: (0, j)),
        ),
        compiler_params=pltpu.CompilerParams(
            dimension_semantics=("parallel",),
            vmem_limit_bytes=vmem_limit,
        ),
        cost_estimate=cost,
    )(x, w_act, w_gate, b_act, b_gate)

    return out_padded[:B, :C]


def gated_head_ref(x, w_t, b):
    y = x @ w_t + b
    C = w_t.shape[1] // 2
    return jax.nn.sigmoid(y[:, :C]) * jax.nn.sigmoid(y[:, C:])


if __name__ == "__main__":
    # Small, deterministic shapes consistent with the module.
    batch, num_features, num_classes = 8, 32, 16

    key = jax.random.PRNGKey(0)
    kx, kw, kb = jax.random.split(key, 3)

    # Deterministic parameter init mimicking torch.nn.Linear default
    # (uniform in +/- 1/sqrt(num_features)).
    bound = 1.0 / (num_features ** 0.5)
    w_t = jax.random.uniform(kw, (num_features, num_classes * 2),
                             minval=-bound, maxval=bound, dtype=jnp.float32)
    b = jax.random.uniform(kb, (num_classes * 2,),
                           minval=-bound, maxval=bound, dtype=jnp.float32)
    x = jax.random.normal(kx, (batch, num_features), dtype=jnp.float32)

    ref = gated_head_ref(x, w_t, b)

    # Exact (f32) weight path: tight tolerance.
    out = jax.block_until_ready(gated_head(x, w_t, b))
    assert out.shape == (batch, num_classes)
    assert jnp.allclose(out, ref, atol=1e-5, rtol=1e-5)

    # Production path: bf16 weight streaming (halves HBM weight traffic),
    # f32 accumulation; looser tolerance for the bf16 weight rounding.
    out_bf16 = jax.block_until_ready(
        gated_head(x, w_t, b, weight_dtype=jnp.bfloat16))
    assert out_bf16.shape == (batch, num_classes)
    assert jnp.allclose(out_bf16, ref, atol=3e-2, rtol=3e-2)

    print("KERNEL_OK")
</pallas_src>

<mosaic_0001>
module attributes {stable_mosaic.version = 11 : i64} {
  func.func @gated_head_kernel(%arg0: i32, %arg1: memref<8x32xf32, #tpu.memory_space<vmem>>, %arg2: memref<32x128xf32, #tpu.memory_space<vmem>>, %arg3: memref<32x128xf32, #tpu.memory_space<vmem>>, %arg4: memref<1x128xf32, #tpu.memory_space<vmem>>, %arg5: memref<1x128xf32, #tpu.memory_space<vmem>>, %arg6: memref<8x128xf32, #tpu.memory_space<vmem>>) attributes {dimension_semantics = [#tpu.dimension_semantics<parallel>], iteration_bounds = array<i64: 1>, scalar_prefetch = 0 : i64, scratch_operands = 0 : i64, tpu.core_type = #tpu.core_type<tc>, window_params = [{pipeline_mode = #tpu.pipeline_mode<synchronous>, transform_indices = @transform_0, window_bounds = array<i64: 8, 32>}, {transform_indices = @transform_1, window_bounds = array<i64: 32, 128>}, {transform_indices = @transform_2, window_bounds = array<i64: 32, 128>}, {transform_indices = @transform_3, window_bounds = array<i64: 1, 128>}, {transform_indices = @transform_4, window_bounds = array<i64: 1, 128>}, {transform_indices = @transform_5, window_bounds = array<i64: 8, 128>}]} {
    %c0 = arith.constant 0 : index
    %c0_0 = arith.constant 0 : index
    %0 = vector.load %arg1[%c0, %c0_0] : memref<8x32xf32, #tpu.memory_space<vmem>>, vector<8x32xf32>
    %c0_1 = arith.constant 0 : index
    %c0_2 = arith.constant 0 : index
    %1 = vector.load %arg2[%c0_1, %c0_2] : memref<32x128xf32, #tpu.memory_space<vmem>>, vector<32x128xf32>
    %cst = arith.constant dense<0.000000e+00> : vector<8x128xf32>
    %2 = tpu.matmul %0, %1, %cst {dimension_numbers = #tpu.dot_dimension_numbers<[1], [0], [0], [1], [0, 0, 1, 1], [], []>} : vector<8x32xf32>, vector<32x128xf32>, vector<8x128xf32> -> vector<8x128xf32>
    %c0_3 = arith.constant 0 : index
    %c0_4 = arith.constant 0 : index
    %3 = vector.load %arg3[%c0_3, %c0_4] : memref<32x128xf32, #tpu.memory_space<vmem>>, vector<32x128xf32>
    %cst_5 = arith.constant dense<0.000000e+00> : vector<8x128xf32>
    %4 = tpu.matmul %0, %3, %cst_5 {dimension_numbers = #tpu.dot_dimension_numbers<[1], [0], [0], [1], [0, 0, 1, 1], [], []>} : vector<8x32xf32>, vector<32x128xf32>, vector<8x128xf32> -> vector<8x128xf32>
    %c0_6 = arith.constant 0 : index
    %c0_7 = arith.constant 0 : index
    %5 = vector.load %arg4[%c0_6, %c0_7] : memref<1x128xf32, #tpu.memory_space<vmem>>, vector<1x128xf32>
    %6 = vector.broadcast %5 : vector<1x128xf32> to vector<8x128xf32>
    %7 = arith.addf %2, %6 : vector<8x128xf32>
    %c0_8 = arith.constant 0 : index
    %c0_9 = arith.constant 0 : index
    %8 = vector.load %arg5[%c0_8, %c0_9] : memref<1x128xf32, #tpu.memory_space<vmem>>, vector<1x128xf32>
    %9 = vector.broadcast %8 : vector<1x128xf32> to vector<8x128xf32>
    %10 = arith.addf %4, %9 : vector<8x128xf32>
    %cst_10 = arith.constant 0.000000e+00 : f32
    %11 = vector.broadcast %cst_10 : f32 to vector<8x128xf32>
    %12 = arith.subf %11, %7 : vector<8x128xf32>
    %13 = math.exp %12 : vector<8x128xf32>
    %cst_11 = arith.constant 1.000000e+00 : f32
    %14 = vector.broadcast %cst_11 : f32 to vector<8x128xf32>
    %15 = arith.addf %14, %13 : vector<8x128xf32>
    %cst_12 = arith.constant 0.000000e+00 : f32
    %16 = vector.broadcast %cst_12 : f32 to vector<8x128xf32>
    %17 = arith.subf %16, %10 : vector<8x128xf32>
    %18 = math.exp %17 : vector<8x128xf32>
    %cst_13 = arith.constant 1.000000e+00 : f32
    %19 = vector.broadcast %cst_13 : f32 to vector<8x128xf32>
    %20 = arith.addf %19, %18 : vector<8x128xf32>
    %21 = arith.mulf %15, %20 : vector<8x128xf32>
    %22 = tpu.reciprocal %21 : vector<8x128xf32> -> vector<8x128xf32>
    %c0_14 = arith.constant 0 : index
    %c0_15 = arith.constant 0 : index
    %23 = vector.load %arg6[%c0_14, %c0_15] : memref<8x128xf32, #tpu.memory_space<vmem>>, vector<8x128xf32>
    tpu.vector_store %arg6[%c0_14, %c0_15], %22 {strides = array<i32>} : memref<8x128xf32, #tpu.memory_space<vmem>>, vector<8x128xf32>,
    return
  }
  func.func @transform_0(%arg0: i32) -> (i32, i32) {
    %c0_i32 = arith.constant 0 : i32
    %c0_i32_0 = arith.constant 0 : i32
    %c0_i32_1 = arith.constant 0 : i32
    return %c0_i32, %c0_i32_0 : i32, i32
  }
  func.func @transform_1(%arg0: i32) -> (i32, i32) {
    %c0_i32 = arith.constant 0 : i32
    %c0_i32_0 = arith.constant 0 : i32
    return %c0_i32, %arg0 : i32, i32
  }
  func.func @transform_2(%arg0: i32) -> (i32, i32) {
    %c0_i32 = arith.constant 0 : i32
    %c0_i32_0 = arith.constant 0 : i32
    return %c0_i32, %arg0 : i32, i32
  }
  func.func @transform_3(%arg0: i32) -> (i32, i32) {
    %c0_i32 = arith.constant 0 : i32
    %c0_i32_0 = arith.constant 0 : i32
    return %c0_i32, %arg0 : i32, i32
  }
  func.func @transform_4(%arg0: i32) -> (i32, i32) {
    %c0_i32 = arith.constant 0 : i32
    %c0_i32_0 = arith.constant 0 : i32
    return %c0_i32, %arg0 : i32, i32
  }
  func.func @transform_5(%arg0: i32) -> (i32, i32) {
    %c0_i32 = arith.constant 0 : i32
    %c0_i32_0 = arith.constant 0 : i32
    return %c0_i32, %arg0 : i32, i32
  }
}

</mosaic_0001>

<llo_original>
// kernel: tpu_custom_call.1
$region0: #{tpu_custom_call.1}
  #allocation0 [shape = 'u32[]', space=smem, size = 0x4, offset = 0x4, fixed_abs, tag = 'smem constant byte address 0x4 - core index']
  #allocation1 [shape = 'u32[72,128]{1,0:T(1,128)}', space=vmem, size = 0x9000, scoped, tag = 'internal scratch']
  %s0 = inlined_call_operand.hbm [shape: f32[8,32], index: 0, kind: input, shape index: {}]
  %s1 = inlined_call_operand.hbm [shape: f32[32,128], index: 1, kind: input, shape index: {}]
  %s2 = inlined_call_operand.hbm [shape: f32[32,128], index: 2, kind: input, shape index: {}]
  %s3 = inlined_call_operand.vmem [shape: f32[1,128], index: 3, kind: input, shape index: {}]
  %s4 = inlined_call_operand.vmem [shape: f32[1,128], index: 4, kind: input, shape index: {}]
  %s5 = inlined_call_operand.hbm [shape: f32[8,128], index: 5, kind: output, shape index: {}]
  %s6 = sld [smem:[#allocation0]]
  $region42: #{tpu_custom_call.1} parent=0
    _
  %s8 = ssub.s32 1, %s6
  %s9 = scalar_select 0, %s8, %s6
  $region1: #{tpu_custom_call.1} parent=0
    #allocation2 [shape = 'u8[4096]{0}', space=vmem, size = 0x1000, scoped, tag = 'input window, operand 0, single buffered']
    #allocation3 [shape = 's32[1]{0}', space=sflag, size = 0x4, scoped, tag = 'scoped memory for tpu_custom_call.1']
    #allocation4 [shape = 's32[1]{0}', space=sflag, size = 0x4, scoped, tag = 'scoped memory for tpu_custom_call.1']
    #allocation5 [shape = 'u8[16384]{0}', space=vmem, size = 0x4000, scoped, tag = 'input window, operand 1, single buffered']
    #allocation6 [shape = 's32[1]{0}', space=sflag, size = 0x4, scoped, tag = 'scoped memory for tpu_custom_call.1']
    #allocation7 [shape = 'u8[16384]{0}', space=vmem, size = 0x4000, scoped, tag = 'input window, operand 2, single buffered']
    #allocation8 [shape = 'u8[4096]{0}', space=vmem, size = 0x1000, scoped, tag = 'output window, operand 0, single buffered']
    %10 = vsyncpa [#allocation3], 0
    %11 = vsyncpa [#allocation6], 0
    %12 = vsyncpa [#allocation4], 0
    // Predicated region
    $region2: #{tpu_custom_call.1} parent=1 // pred_check
      _
    $region3: #{tpu_custom_call.1} parent=1 // pred_check_branch
      %14 = sbr.rel (0) target = $region5
    $region4: #{tpu_custom_call.1} parent=1 // pred_region
      %16 = vsyncadd [#allocation3], 0
      %s18 = sshll.u32 %s0, 4
      %s19 = int_to_ptr.hbm [resolvable:$true] %s18
      %s20 = sshll.u32 [#allocation2], 4
      %s21 = int_to_ptr.vmem [resolvable:$true] %s20
      %23 = dma.hbm_to_vmem [thread:$0]  %s19, 128, %s21, [#allocation3]
    $region5: #{tpu_custom_call.1} parent=1 // pred_fallthru
      _
    // Predicated region
    $region6: #{tpu_custom_call.1} parent=1 // pred_check
      _
    $region7: #{tpu_custom_call.1} parent=1 // pred_check_branch
      %25 = sbr.rel (0) target = $region9
    $region8: #{tpu_custom_call.1} parent=1 // pred_region
      %27 = vsyncadd [#allocation6], 0
      %s28 = sshll.u32 %s1, 4
      %s29 = int_to_ptr.hbm [resolvable:$true] %s28
      %s30 = sshll.u32 [#allocation5], 4
      %s31 = int_to_ptr.vmem [resolvable:$true] %s30
      %36 = dma.hbm_to_vmem [thread:$0]  %s29, 512, %s31, [#allocation6], 128, 128, 8
    $region9: #{tpu_custom_call.1} parent=1 // pred_fallthru
      _
    // Predicated region
    $region10: #{tpu_custom_call.1} parent=1 // pred_check
      _
    $region11: #{tpu_custom_call.1} parent=1 // pred_check_branch
      %38 = sbr.rel (0) target = $region13
    $region12: #{tpu_custom_call.1} parent=1 // pred_region
      %40 = vsyncadd [#allocation6], 0
      %s41 = sshll.u32 %s2, 4
      %s42 = int_to_ptr.hbm [resolvable:$true] %s41
      %s43 = sshll.u32 [#allocation7], 4
      %s44 = int_to_ptr.vmem [resolvable:$true] %s43
      %49 = dma.hbm_to_vmem [thread:$0]  %s42, 512, %s44, [#allocation6], 128, 128, 8
    $region13: #{tpu_custom_call.1} parent=1 // pred_fallthru
      _
    // Predicated region
    $region14: #{tpu_custom_call.1} parent=1 // pred_check
      _
    $region15: #{tpu_custom_call.1} parent=1 // pred_check_branch
      %51 = sbr.rel (0) target = $region17
    $region16: #{tpu_custom_call.1} parent=1 // pred_region
      _
    $region17: #{tpu_custom_call.1} parent=1 // pred_fallthru
      _
    // Predicated region
    $region18: #{tpu_custom_call.1} parent=1 // pred_check
      _
    $region19: #{tpu_custom_call.1} parent=1 // pred_check_branch
      %53 = sbr.rel (0) target = $region21
    $region20: #{tpu_custom_call.1} parent=1 // pred_region
      _
    $region21: #{tpu_custom_call.1} parent=1 // pred_fallthru
      _
    // Predicated region
    $region22: #{tpu_custom_call.1} parent=1 // pred_check
      _
    $region23: #{tpu_custom_call.1} parent=1 // pred_check_branch
      %55 = sbr.rel (0) target = $region25
    $region24: #{tpu_custom_call.1} parent=1 // pred_region
      %57 = dma.done [#allocation3], 128
    $region25: #{tpu_custom_call.1} parent=1 // pred_fallthru
      _
    // Predicated region
    $region26: #{tpu_custom_call.1} parent=1 // pred_check
      _
    $region27: #{tpu_custom_call.1} parent=1 // pred_check_branch
      %59 = sbr.rel (0) target = $region29
    $region28: #{tpu_custom_call.1} parent=1 // pred_region
      %61 = dma.done [#allocation6], 512
    $region29: #{tpu_custom_call.1} parent=1 // pred_fallthru
      _
    // Predicated region
    $region30: #{tpu_custom_call.1} parent=1 // pred_check
      _
    $region31: #{tpu_custom_call.1} parent=1 // pred_check_branch
      %63 = sbr.rel (0) target = $region33
    $region32: #{tpu_custom_call.1} parent=1 // pred_region
      %65 = dma.done [#allocation6], 512
    $region33: #{tpu_custom_call.1} parent=1 // pred_fallthru
      _
    %v66 = vld [vmem:[#allocation2] sm:$0xff]
    %v67 = vld [vmem:[#allocation5] sm:$0xff]
    %v68 = vld [vmem:[#allocation5 + $0x8] sm:$0xff]
    %v69 = vld [vmem:[#allocation5 + $0x10] sm:$0xff]
    %v70 = vld [vmem:[#allocation5 + $0x18] sm:$0xff]
    %v71 = vld [vmem:[#allocation7] sm:$0xff]
    %v72 = vld [vmem:[#allocation7 + $0x8] sm:$0xff]
    %v73 = vld [vmem:[#allocation7 + $0x10] sm:$0xff]
    %v74 = vld [vmem:[#allocation7 + $0x18] sm:$0xff]
    %v75 = vld [vmem:[%s3] sm:$0x1]
    %v77 = vperm.slane %v75, 0
    %vm79 = vcmask 261120
    %v81 = vsel %vm79, %v66, 0
    %83 = vmatpush.msra.mxu0 0.0
    %84 = vmatpush.msra.mxu0 0.0
    %85 = vmatpush.msra.mxu0 0.0
    %86 = vmatpush.msra.mxu0 0.0
    %87 = vmatpush.msra.mxu0 0.0
    %88 = vmatpush.msra.mxu0 0.0
    %89 = vmatpush.msra.mxu0 0.0
    %90 = vmatpush.msra.mxu0 0.0
    %91 = vmatpush.msra.mxu0 0.0
    %92 = vmatpush.msra.mxu0 0.0
    %93 = vmatpush.msra.mxu0 0.0
    %94 = vmatpush.msra.mxu0 0.0
    %95 = vmatpush.msra.mxu0 %v70
    %96 = vmatpush.msra.mxu0 %v69
    %97 = vmatpush.msra.mxu0 %v68
    %98 = vmatpush.msra.mxu0 %v67
    %99 = vmatmul.f32.gmra.mxu0 %v81
    %v100 = vpop.f32.mrf.mxu0
    %v101 = vadd.f32 %v77, %v100
    %102 = vdwg.mxu0
    %v103 = vld [vmem:[%s4] sm:$0x1]
    %v105 = vperm.slane %v103, 0
    %107 = vmatpush.msra.mxu0 0.0
    %108 = vmatpush.msra.mxu0 0.0
    %109 = vmatpush.msra.mxu0 0.0
    %110 = vmatpush.msra.mxu0 0.0
    %111 = vmatpush.msra.mxu0 0.0
    %112 = vmatpush.msra.mxu0 0.0
    %113 = vmatpush.msra.mxu0 0.0
    %114 = vmatpush.msra.mxu0 0.0
    %115 = vmatpush.msra.mxu0 0.0
    %116 = vmatpush.msra.mxu0 0.0
    %117 = vmatpush.msra.mxu0 0.0
    %118 = vmatpush.msra.mxu0 0.0
    %119 = vmatpush.msra.mxu0 %v74
    %120 = vmatpush.msra.mxu0 %v73
    %121 = vmatpush.msra.mxu0 %v72
    %122 = vmatpush.msra.mxu0 %v71
    %123 = vmatmul.f32.gmra.mxu0 %v81
    %v124 = vpop.f32.mrf.mxu0
    %v125 = vadd.f32 %v105, %v124
    %126 = vdwg.mxu0
    %v127 = vsub.f32 0.0, %v101
    %v128 = vmul.f32 %v127, 1.442695
    %v129 = vpow.pop %v128
    %v130 = vadd.f32 %v129, 1.0
    %v131 = vsub.f32 0.0, %v125
    %v132 = vmul.f32 %v131, 1.442695
    %v133 = vpow.pop %v132
    %v134 = vadd.f32 %v133, 1.0
    %v135 = vmul.f32 %v130, %v134
    %v136 = vrcp.pop %v135
    %v137 = vmul.f32 %v135, %v136
    %v138 = vsub.f32 1.0, %v137
    %v139 = vmul.f32 %v136, %v138
    %v140 = vadd.f32 %v136, %v139
    %vm141 = vweird.f32 %v135
    %vm142 = vweird.f32 %v136
    %vm143 = vmor %vm141, %vm142
    %v144 = vsel %vm143, %v136, %v140
    %v145 = vand.u32 2147483647, %v135
    %vm146 = vcmp.eq.f32.partialorder %v145, 8.507059e+37
    %v147 = vand.u32 %v135, 2147483648
    %v148 = vor.u32 1.1754944e-38, %v147
    %v149 = vsel %vm146, %v148, %v144
    %150 = vst [vmem:[#allocation8] sm:$0xff] %v149
    // Predicated region
    $region34: #{tpu_custom_call.1} parent=1 // pred_check
      _
    $region35: #{tpu_custom_call.1} parent=1 // pred_check_branch
      %152 = sbr.rel (0) target = $region37
    $region36: #{tpu_custom_call.1} parent=1 // pred_region
      %154 = vsyncadd [#allocation4], 0
      %s156 = sshll.u32 [#allocation8], 4
      %s157 = int_to_ptr.vmem [resolvable:$true] %s156
      %s158 = sshll.u32 %s5, 4
      %s159 = int_to_ptr.hbm [resolvable:$true] %s158
      %161 = dma.vmem_to_hbm [thread:$0]  %s157, 128, %s159, [#allocation4]
    $region37: #{tpu_custom_call.1} parent=1 // pred_fallthru
      _
    // Predicated region
    $region38: #{tpu_custom_call.1} parent=1 // pred_check
      _
    $region39: #{tpu_custom_call.1} parent=1 // pred_check_branch
      %163 = sbr.rel (0) target = $region41
    $region40: #{tpu_custom_call.1} parent=1 // pred_region
      %165 = dma.done [#allocation4], 128
    $region41: #{tpu_custom_call.1} parent=1 // pred_fallthru
      _
    %166 = vsyncpa [#allocation3], 1
    %167 = vsyncpa [#allocation6], 1
    %168 = vsyncpa [#allocation4], 1

</llo_original>
